<compile_context>
chip_gen: v7x
topology: tpu7x:2x2x1
jax: 0.10.0
libtpu: 0.0.40
codegen_flags: <defaults>
</compile_context>

<pallas_src>
import jax
import jax.numpy as jnp
from jax.experimental import pallas as pl
from jax.experimental.pallas import tpu as pltpu

PACK = 8                       # samples packed per VMEM row (8 * 14 = 112 lanes)
F_IN, H1, H2, F_OUT = 14, 16, 8, 1


def _round_up(n, m):
    return ((n + m - 1) // m) * m


def _block_diag(block, n):
    """(fin, fout) -> (n*fin, n*fout) block-diagonal matrix (trace-time, tiny)."""
    fin, fout = block.shape
    eye = jnp.eye(n, dtype=block.dtype)
    bd = eye[:, None, :, None] * block[None, :, None, :]      # (n, fin, n, fout)
    return bd.reshape(n * fin, n * fout)


def _mlp_kernel(x_ref, w1_ref, b1_ref, w2_ref, b2_ref, w3_ref, b3_ref, o_ref):
    # x_ref: (tile_rows, 112) -- 8 samples per row.  All matmuls are plain
    # natural-layout LHS @ RHS; no transpose of the large operand anywhere.
    x = x_ref[...]
    h1 = jnp.dot(x, w1_ref[...], preferred_element_type=jnp.float32)
    h1 = jnp.maximum(h1 + b1_ref[...], 0.0)                   # (tile_rows, 128)
    h2 = jnp.dot(h1, w2_ref[...], preferred_element_type=jnp.float32)
    h2 = jnp.maximum(h2 + b2_ref[...], 0.0)                   # (tile_rows, 64)
    y = jnp.dot(h2, w3_ref[...], preferred_element_type=jnp.float32)
    o_ref[...] = (y + b3_ref[...]).astype(o_ref.dtype)        # (tile_rows, 8)


def demand_predictor_forward(x, params, *, tile_b=32768, use_bf16=False):
    """x: (B, 14) f32 -> (B, 1) f32.  params in PyTorch nn.Linear layout."""
    w1, b1, w2, b2, w3, b3 = params
    B, F = x.shape
    assert F == F_IN

    # --- pack 8 samples per row; pad B only to a multiple of PACK (<=7 rows) --
    B_pad = _round_up(B, PACK)
    if B_pad != B:
        x = jnp.pad(x, ((0, B_pad - B), (0, 0)))
    rows = B_pad // PACK
    x_packed = x.reshape(rows, PACK * F_IN)                    # (rows, 112)

    # --- block-diagonal weights / lane-tiled biases (trace-time, tiny) --------
    w1_bd = _block_diag(w1.T, PACK)                            # (112, 128)
    w2_bd = _block_diag(w2.T, PACK)                            # (128, 64)
    w3_bd = _block_diag(w3.T, PACK)                            # (64, 8)
    b1_bd = jnp.tile(b1.reshape(-1), PACK).reshape(1, PACK * H1)
    b2_bd = jnp.tile(b2.reshape(-1), PACK).reshape(1, PACK * H2)
    b3_bd = jnp.tile(b3.reshape(-1), PACK).reshape(1, PACK * F_OUT)

    if use_bf16:
        # Halves HBM traffic for x (the only large operand); accum stays f32.
        x_packed = x_packed.astype(jnp.bfloat16)
        w1_bd = w1_bd.astype(jnp.bfloat16)

    # --- batch tile in packed rows --------------------------------------------
    desired = max(8, (max(tile_b, PACK) // PACK) // 8 * 8)     # multiple of 8
    if rows >= 2048:
        # Keep >= 2 grid steps: shards across both v7x TCs via ("parallel",)
        # and enables DMA/compute overlap on single-TC chips.
        desired = min(desired, _round_up((rows + 1) // 2, 8))
    tile_rows = rows if rows <= desired else desired           # rows: full-dim block
    grid = (pl.cdiv(rows, tile_rows),)

    # --- VMEM estimate: x + out double-buffers, h1/h2 temporaries, weights ----
    x_itemsize = 2 if use_bf16 else 4
    est_vmem = (2 * tile_rows * 128 * x_itemsize       # x  (112 lanes pad to 128)
                + 2 * tile_rows * 128 * 4              # out (8 lanes pad to 128)
                + 2 * tile_rows * 128 * 4              # h1 + h2 temporaries
                + (2 << 20))                           # weights/biases + headroom
    cp_kwargs = dict(dimension_semantics=("parallel",))
    if est_vmem > (16 << 20):                          # above smallest (v5e) default
        cp_kwargs["vmem_limit_bytes"] = min(est_vmem, 48 << 20)   # v7x headroom

    out = pl.pallas_call(
        _mlp_kernel,
        out_shape=jax.ShapeDtypeStruct((rows, PACK * F_OUT), jnp.float32),
        grid_spec=pltpu.PrefetchScalarGridSpec(
            num_scalar_prefetch=0,
            grid=grid,
            in_specs=[
                pl.BlockSpec((tile_rows, PACK * F_IN), lambda i: (i, 0)),   # x
                pl.BlockSpec(w1_bd.shape, lambda i: (0, 0)),   # w1_bd (VMEM-resident)
                pl.BlockSpec(b1_bd.shape, lambda i: (0, 0)),   # b1_bd
                pl.BlockSpec(w2_bd.shape, lambda i: (0, 0)),   # w2_bd
                pl.BlockSpec(b2_bd.shape, lambda i: (0, 0)),   # b2_bd
                pl.BlockSpec(w3_bd.shape, lambda i: (0, 0)),   # w3_bd
                pl.BlockSpec(b3_bd.shape, lambda i: (0, 0)),   # b3_bd
            ],
            out_specs=pl.BlockSpec((tile_rows, PACK * F_OUT), lambda i: (i, 0)),
        ),
        compiler_params=pltpu.CompilerParams(**cp_kwargs),
    )(x_packed, w1_bd, b1_bd, w2_bd, b2_bd, w3_bd, b3_bd)

    # (rows, 8) in row-major order is exactly flat sample order.
    return out.reshape(B_pad, 1)[:B]


def init_params(key):
    """Deterministic init matching PyTorch nn.Linear (weights (out, in), bias (out,))."""
    ks = jax.random.split(key, 6)

    def lin(kw, kb, fan_in, fan_out):
        bound = 1.0 / jnp.sqrt(fan_in)
        w = jax.random.uniform(kw, (fan_out, fan_in), jnp.float32, -bound, bound)
        b = jax.random.uniform(kb, (fan_out,), jnp.float32, -bound, bound)
        return w, b

    w1, b1 = lin(ks[0], ks[1], F_IN, H1)
    w2, b2 = lin(ks[2], ks[3], H1, H2)
    w3, b3 = lin(ks[4], ks[5], H2, F_OUT)
    return (w1, b1, w2, b2, w3, b3)


def reference_forward(x, params):
    w1, b1, w2, b2, w3, b3 = params
    h = jnp.maximum(x @ w1.T + b1, 0.0)
    h = jnp.maximum(h @ w2.T + b2, 0.0)
    return h @ w3.T + b3


if __name__ == "__main__":
    key = jax.random.PRNGKey(0)
    kp, kx, kx2 = jax.random.split(key, 3)
    params = init_params(kp)

    # Small canonical check (single full block).
    batch = 8
    x = jax.random.normal(kx, (batch, F_IN), dtype=jnp.float32)
    out = jax.block_until_ready(demand_predictor_forward(x, params))
    ref = reference_forward(x, params)
    assert out.shape == (batch, 1), out.shape
    assert jnp.allclose(out, ref, atol=1e-5, rtol=1e-5), (out, ref)

    # Ragged check: batch not a multiple of the pack factor or the tile, so both
    # the pad path and the clipped tail grid block are exercised.
    batch2 = 300
    x2 = jax.random.normal(kx2, (batch2, F_IN), dtype=jnp.float32)
    out2 = jax.block_until_ready(demand_predictor_forward(x2, params, tile_b=64))
    ref2 = reference_forward(x2, params)
    assert out2.shape == (batch2, 1), out2.shape
    assert jnp.allclose(out2, ref2, atol=1e-5, rtol=1e-5)

    print("KERNEL_OK")
</pallas_src>

<mosaic_0001>
module attributes {stable_mosaic.version = 11 : i64} {
  func.func @_mlp_kernel(%arg0: i32, %arg1: memref<1x112xf32, #tpu.memory_space<vmem>>, %arg2: memref<112x128xf32, #tpu.memory_space<vmem>>, %arg3: memref<1x128xf32, #tpu.memory_space<vmem>>, %arg4: memref<128x64xf32, #tpu.memory_space<vmem>>, %arg5: memref<1x64xf32, #tpu.memory_space<vmem>>, %arg6: memref<64x8xf32, #tpu.memory_space<vmem>>, %arg7: memref<1x8xf32, #tpu.memory_space<vmem>>, %arg8: memref<1x8xf32, #tpu.memory_space<vmem>>) attributes {dimension_semantics = [#tpu.dimension_semantics<parallel>], iteration_bounds = array<i64: 1>, scalar_prefetch = 0 : i64, scratch_operands = 0 : i64, tpu.core_type = #tpu.core_type<tc>, window_params = [{transform_indices = @transform_0, window_bounds = array<i64: 1, 112>}, {pipeline_mode = #tpu.pipeline_mode<synchronous>, transform_indices = @transform_1, window_bounds = array<i64: 112, 128>}, {pipeline_mode = #tpu.pipeline_mode<synchronous>, transform_indices = @transform_2, window_bounds = array<i64: 1, 128>}, {pipeline_mode = #tpu.pipeline_mode<synchronous>, transform_indices = @transform_3, window_bounds = array<i64: 128, 64>}, {pipeline_mode = #tpu.pipeline_mode<synchronous>, transform_indices = @transform_4, window_bounds = array<i64: 1, 64>}, {pipeline_mode = #tpu.pipeline_mode<synchronous>, transform_indices = @transform_5, window_bounds = array<i64: 64, 8>}, {pipeline_mode = #tpu.pipeline_mode<synchronous>, transform_indices = @transform_6, window_bounds = array<i64: 1, 8>}, {transform_indices = @transform_7, window_bounds = array<i64: 1, 8>}]} {
    %c0 = arith.constant 0 : index
    %c0_0 = arith.constant 0 : index
    %0 = vector.load %arg1[%c0, %c0_0] : memref<1x112xf32, #tpu.memory_space<vmem>>, vector<1x112xf32>
    %c0_1 = arith.constant 0 : index
    %c0_2 = arith.constant 0 : index
    %1 = vector.load %arg2[%c0_1, %c0_2] : memref<112x128xf32, #tpu.memory_space<vmem>>, vector<112x128xf32>
    %cst = arith.constant dense<0.000000e+00> : vector<1x128xf32>
    %2 = tpu.matmul %0, %1, %cst {dimension_numbers = #tpu.dot_dimension_numbers<[1], [0], [0], [1], [0, 0, 1, 1], [], []>} : vector<1x112xf32>, vector<112x128xf32>, vector<1x128xf32> -> vector<1x128xf32>
    %c0_3 = arith.constant 0 : index
    %c0_4 = arith.constant 0 : index
    %3 = vector.load %arg3[%c0_3, %c0_4] : memref<1x128xf32, #tpu.memory_space<vmem>>, vector<1x128xf32>
    %4 = arith.addf %2, %3 : vector<1x128xf32>
    %cst_5 = arith.constant 0.000000e+00 : f32
    %5 = vector.broadcast %cst_5 : f32 to vector<1x128xf32>
    %6 = arith.maximumf %4, %5 : vector<1x128xf32>
    %c0_6 = arith.constant 0 : index
    %c0_7 = arith.constant 0 : index
    %7 = vector.load %arg4[%c0_6, %c0_7] : memref<128x64xf32, #tpu.memory_space<vmem>>, vector<128x64xf32>
    %cst_8 = arith.constant dense<0.000000e+00> : vector<1x64xf32>
    %8 = tpu.matmul %6, %7, %cst_8 {dimension_numbers = #tpu.dot_dimension_numbers<[1], [0], [0], [1], [0, 0, 1, 1], [], []>} : vector<1x128xf32>, vector<128x64xf32>, vector<1x64xf32> -> vector<1x64xf32>
    %c0_9 = arith.constant 0 : index
    %c0_10 = arith.constant 0 : index
    %9 = vector.load %arg5[%c0_9, %c0_10] : memref<1x64xf32, #tpu.memory_space<vmem>>, vector<1x64xf32>
    %10 = arith.addf %8, %9 : vector<1x64xf32>
    %cst_11 = arith.constant 0.000000e+00 : f32
    %11 = vector.broadcast %cst_11 : f32 to vector<1x64xf32>
    %12 = arith.maximumf %10, %11 : vector<1x64xf32>
    %c0_12 = arith.constant 0 : index
    %c0_13 = arith.constant 0 : index
    %13 = vector.load %arg6[%c0_12, %c0_13] : memref<64x8xf32, #tpu.memory_space<vmem>>, vector<64x8xf32>
    %cst_14 = arith.constant dense<0.000000e+00> : vector<1x8xf32>
    %14 = tpu.matmul %12, %13, %cst_14 {dimension_numbers = #tpu.dot_dimension_numbers<[1], [0], [0], [1], [0, 0, 1, 1], [], []>} : vector<1x64xf32>, vector<64x8xf32>, vector<1x8xf32> -> vector<1x8xf32>
    %c0_15 = arith.constant 0 : index
    %c0_16 = arith.constant 0 : index
    %15 = vector.load %arg7[%c0_15, %c0_16] : memref<1x8xf32, #tpu.memory_space<vmem>>, vector<1x8xf32>
    %16 = arith.addf %14, %15 : vector<1x8xf32>
    %c0_17 = arith.constant 0 : index
    %c0_18 = arith.constant 0 : index
    %17 = vector.load %arg8[%c0_17, %c0_18] : memref<1x8xf32, #tpu.memory_space<vmem>>, vector<1x8xf32>
    tpu.vector_store %arg8[%c0_17, %c0_18], %16 {strides = array<i32>} : memref<1x8xf32, #tpu.memory_space<vmem>>, vector<1x8xf32>,
    return
  }
  func.func @transform_0(%arg0: i32) -> (i32, i32) {
    %c0_i32 = arith.constant 0 : i32
    %c0_i32_0 = arith.constant 0 : i32
    return %arg0, %c0_i32 : i32, i32
  }
  func.func @transform_1(%arg0: i32) -> (i32, i32) {
    %c0_i32 = arith.constant 0 : i32
    %c0_i32_0 = arith.constant 0 : i32
    %c0_i32_1 = arith.constant 0 : i32
    return %c0_i32, %c0_i32_0 : i32, i32
  }
  func.func @transform_2(%arg0: i32) -> (i32, i32) {
    %c0_i32 = arith.constant 0 : i32
    %c0_i32_0 = arith.constant 0 : i32
    %c0_i32_1 = arith.constant 0 : i32
    return %c0_i32, %c0_i32_0 : i32, i32
  }
  func.func @transform_3(%arg0: i32) -> (i32, i32) {
    %c0_i32 = arith.constant 0 : i32
    %c0_i32_0 = arith.constant 0 : i32
    %c0_i32_1 = arith.constant 0 : i32
    return %c0_i32, %c0_i32_0 : i32, i32
  }
  func.func @transform_4(%arg0: i32) -> (i32, i32) {
    %c0_i32 = arith.constant 0 : i32
    %c0_i32_0 = arith.constant 0 : i32
    %c0_i32_1 = arith.constant 0 : i32
    return %c0_i32, %c0_i32_0 : i32, i32
  }
  func.func @transform_5(%arg0: i32) -> (i32, i32) {
    %c0_i32 = arith.constant 0 : i32
    %c0_i32_0 = arith.constant 0 : i32
    %c0_i32_1 = arith.constant 0 : i32
    return %c0_i32, %c0_i32_0 : i32, i32
  }
  func.func @transform_6(%arg0: i32) -> (i32, i32) {
    %c0_i32 = arith.constant 0 : i32
    %c0_i32_0 = arith.constant 0 : i32
    %c0_i32_1 = arith.constant 0 : i32
    return %c0_i32, %c0_i32_0 : i32, i32
  }
  func.func @transform_7(%arg0: i32) -> (i32, i32) {
    %c0_i32 = arith.constant 0 : i32
    %c0_i32_0 = arith.constant 0 : i32
    return %arg0, %c0_i32 : i32, i32
  }
}

</mosaic_0001>

<llo_original>
// kernel: tpu_custom_call.1
$region0: #{tpu_custom_call.1}
  #allocation0 [shape = 'u32[]', space=smem, size = 0x4, offset = 0x4, fixed_abs, tag = 'smem constant byte address 0x4 - core index']
  #allocation1 [shape = 'u32[144,128]{1,0:T(1,128)}', space=vmem, size = 0x12000, scoped, tag = 'internal scratch']
  %s0 = inlined_call_operand.vmem [shape: f32[1,112], index: 0, kind: input, shape index: {}]
  %s1 = inlined_call_operand.vmem [shape: f32[112,128], index: 1, kind: input, shape index: {}]
  %s2 = inlined_call_operand.vmem [shape: f32[1,128], index: 2, kind: input, shape index: {}]
  %s3 = inlined_call_operand.vmem [shape: f32[128,64], index: 3, kind: input, shape index: {}]
  %s4 = inlined_call_operand.vmem [shape: f32[1,64], index: 4, kind: input, shape index: {}]
  %s5 = inlined_call_operand.vmem [shape: f32[64,8], index: 5, kind: input, shape index: {}]
  %s6 = inlined_call_operand.vmem [shape: f32[1,8], index: 6, kind: input, shape index: {}]
  %s7 = inlined_call_operand.hbm [shape: f32[1,8], index: 7, kind: output, shape index: {}]
  %s8 = sld [smem:[#allocation0]]
  $region38: #{tpu_custom_call.1} parent=0
    _
  %s10 = ssub.s32 1, %s8
  %s11 = scalar_select 0, %s10, %s8
  $region1: #{tpu_custom_call.1} parent=0
    #allocation2 [shape = 'u8[512]{0}', space=vmem, size = 0x400, scoped, tag = 'output window, operand 0, single buffered']
    #allocation3 [shape = 's32[1]{0}', space=sflag, size = 0x4, scoped, tag = 'scoped memory for tpu_custom_call.1']
    %12 = vsyncpa [#allocation3], 0
    // Predicated region
    $region2: #{tpu_custom_call.1} parent=1 // pred_check
      _
    $region3: #{tpu_custom_call.1} parent=1 // pred_check_branch
      %14 = sbr.rel (0) target = $region5
    $region4: #{tpu_custom_call.1} parent=1 // pred_region
      _
    $region5: #{tpu_custom_call.1} parent=1 // pred_fallthru
      _
    // Predicated region
    $region6: #{tpu_custom_call.1} parent=1 // pred_check
      _
    $region7: #{tpu_custom_call.1} parent=1 // pred_check_branch
      %16 = sbr.rel (0) target = $region9
    $region8: #{tpu_custom_call.1} parent=1 // pred_region
      _
    $region9: #{tpu_custom_call.1} parent=1 // pred_fallthru
      _
    // Predicated region
    $region10: #{tpu_custom_call.1} parent=1 // pred_check
      _
    $region11: #{tpu_custom_call.1} parent=1 // pred_check_branch
      %18 = sbr.rel (0) target = $region13
    $region12: #{tpu_custom_call.1} parent=1 // pred_region
      _
    $region13: #{tpu_custom_call.1} parent=1 // pred_fallthru
      _
    // Predicated region
    $region14: #{tpu_custom_call.1} parent=1 // pred_check
      _
    $region15: #{tpu_custom_call.1} parent=1 // pred_check_branch
      %20 = sbr.rel (0) target = $region17
    $region16: #{tpu_custom_call.1} parent=1 // pred_region
      _
    $region17: #{tpu_custom_call.1} parent=1 // pred_fallthru
      _
    // Predicated region
    $region18: #{tpu_custom_call.1} parent=1 // pred_check
      _
    $region19: #{tpu_custom_call.1} parent=1 // pred_check_branch
      %22 = sbr.rel (0) target = $region21
    $region20: #{tpu_custom_call.1} parent=1 // pred_region
      _
    $region21: #{tpu_custom_call.1} parent=1 // pred_fallthru
      _
    // Predicated region
    $region22: #{tpu_custom_call.1} parent=1 // pred_check
      _
    $region23: #{tpu_custom_call.1} parent=1 // pred_check_branch
      %24 = sbr.rel (0) target = $region25
    $region24: #{tpu_custom_call.1} parent=1 // pred_region
      _
    $region25: #{tpu_custom_call.1} parent=1 // pred_fallthru
      _
    // Predicated region
    $region26: #{tpu_custom_call.1} parent=1 // pred_check
      _
    $region27: #{tpu_custom_call.1} parent=1 // pred_check_branch
      %26 = sbr.rel (0) target = $region29
    $region28: #{tpu_custom_call.1} parent=1 // pred_region
      _
    $region29: #{tpu_custom_call.1} parent=1 // pred_fallthru
      _
    %v27 = vld [vmem:[%s0] sm:$0x1]
    %v28 = vld [vmem:[%s1] sm:$0xff]
    %v29 = vld [vmem:[%s1 + $0x8] sm:$0xff]
    %v30 = vld [vmem:[%s1 + $0x10] sm:$0xff]
    %v31 = vld [vmem:[%s1 + $0x18] sm:$0xff]
    %v32 = vld [vmem:[%s1 + $0x20] sm:$0xff]
    %v33 = vld [vmem:[%s1 + $0x28] sm:$0xff]
    %v34 = vld [vmem:[%s1 + $0x30] sm:$0xff]
    %v35 = vld [vmem:[%s1 + $0x38] sm:$0xff]
    %v36 = vld [vmem:[%s1 + $0x40] sm:$0xff]
    %v37 = vld [vmem:[%s1 + $0x48] sm:$0xff]
    %v38 = vld [vmem:[%s1 + $0x50] sm:$0xff]
    %v39 = vld [vmem:[%s1 + $0x58] sm:$0xff]
    %v40 = vld [vmem:[%s1 + $0x60] sm:$0xff]
    %v41 = vld [vmem:[%s1 + $0x68] sm:$0xff]
    %v42 = vld [vmem:[%s2] sm:$0x1]
    %vm43 = vcmask 916480
    %v45 = vsel %vm43, %v27, 0
    %47 = vmatprep.subr.mxu0 0.0
    %48 = vmatpush1.msra.mxu0 %v28
    %49 = vmatprep.subr.mxu0 0.0
    %50 = vmatpush1.msra.mxu0 %v29
    %51 = vmatprep.subr.mxu0 0.0
    %52 = vmatpush1.msra.mxu0 %v30
    %53 = vmatprep.subr.mxu0 0.0
    %54 = vmatpush1.msra.mxu0 %v31
    %55 = vmatprep.subr.mxu0 0.0
    %56 = vmatpush1.msra.mxu0 %v32
    %57 = vmatprep.subr.mxu0 0.0
    %58 = vmatpush1.msra.mxu0 %v33
    %59 = vmatprep.subr.mxu0 0.0
    %60 = vmatpush1.msra.mxu0 %v34
    %61 = vmatprep.subr.mxu0 0.0
    %62 = vmatpush1.msra.mxu0 %v35
    %63 = vmatprep.subr.mxu0 0.0
    %64 = vmatpush1.msra.mxu0 %v36
    %65 = vmatprep.subr.mxu0 0.0
    %66 = vmatpush1.msra.mxu0 %v37
    %67 = vmatprep.subr.mxu0 0.0
    %68 = vmatpush1.msra.mxu0 %v38
    %69 = vmatprep.subr.mxu0 0.0
    %70 = vmatpush1.msra.mxu0 %v39
    %71 = vmatprep.subr.mxu0 0.0
    %72 = vmatpush1.msra.mxu0 %v40
    %73 = vmatprep.subr.mxu0 0.0
    %74 = vmatpush1.msra.mxu0 %v41
    %75 = vmatprep.subr.mxu0 0.0
    %76 = vmatpush1.msra.mxu0 0.0
    %77 = vmatprep.subr.mxu0 0.0
    %78 = vmatpush1.msra.mxu0 0.0
    %79 = vmatprep.subr.mxu0 0.0
    %80 = vmatpush1.msra.mxu0 0.0
    %81 = vmatprep.subr.mxu0 0.0
    %82 = vmatpush1.msra.mxu0 0.0
    %83 = vmatprep.subr.mxu0 0.0
    %84 = vmatpush1.msra.mxu0 0.0
    %85 = vmatprep.subr.mxu0 0.0
    %86 = vmatpush1.msra.mxu0 0.0
    %87 = vmatprep.subr.mxu0 0.0
    %88 = vmatpush1.msra.mxu0 0.0
    %89 = vmatprep.subr.mxu0 0.0
    %90 = vmatpush1.msra.mxu0 0.0
    %91 = vmatprep.subr.mxu0 0.0
    %92 = vmatpush1.msra.mxu0 0.0
    %93 = vmatprep.subr.mxu0 0.0
    %94 = vmatpush1.msra.mxu0 0.0
    %95 = vmatprep.subr.mxu0 0.0
    %96 = vmatpush1.msra.mxu0 0.0
    %97 = vmatprep.subr.mxu0 0.0
    %98 = vmatpush1.msra.mxu0 0.0
    %99 = vmatprep.subr.mxu0 0.0
    %100 = vmatpush1.msra.mxu0 0.0
    %101 = vmatprep.subr.mxu0 0.0
    %102 = vmatpush1.msra.mxu0 0.0
    %103 = vmatprep.subr.mxu0 0.0
    %104 = vmatpush1.msra.mxu0 0.0
    %105 = vmatprep.subr.mxu0 0.0
    %106 = vmatpush1.msra.mxu0 0.0
    %107 = vmatprep.subr.mxu0 0.0
    %108 = vmatpush1.msra.mxu0 0.0
    %109 = vmatprep.subr.mxu0 0.0
    %110 = vmatpush1.msra.mxu0 0.0
    %111 = vmatprep.mubr.f32.mxu0 0.0
    %112 = vmatmul.mubr.f32.gmra.mrb[0].mxu0 %v45
    %v113 = vpop.f32.mrb[0].mxu0
    %v114 = vadd.f32 %v42, %v113
    %v115 = vpop.f32.mrb[0].mxu0
    %116 = vdwg.mxu0
    %v117 = vmax.f32 %v114, 0.0
    %v118 = vld [vmem:[%s3] sm:$0xff]
    %v119 = vld [vmem:[%s3 + $0x8] sm:$0xff]
    %v120 = vld [vmem:[%s3 + $0x10] sm:$0xff]
    %v121 = vld [vmem:[%s3 + $0x18] sm:$0xff]
    %v122 = vld [vmem:[%s3 + $0x20] sm:$0xff]
    %v123 = vld [vmem:[%s3 + $0x28] sm:$0xff]
    %v124 = vld [vmem:[%s3 + $0x30] sm:$0xff]
    %v125 = vld [vmem:[%s3 + $0x38] sm:$0xff]
    %v126 = vld [vmem:[%s3 + $0x40] sm:$0xff]
    %v127 = vld [vmem:[%s3 + $0x48] sm:$0xff]
    %v128 = vld [vmem:[%s3 + $0x50] sm:$0xff]
    %v129 = vld [vmem:[%s3 + $0x58] sm:$0xff]
    %v130 = vld [vmem:[%s3 + $0x60] sm:$0xff]
    %v131 = vld [vmem:[%s3 + $0x68] sm:$0xff]
    %v132 = vld [vmem:[%s3 + $0x70] sm:$0xff]
    %v133 = vld [vmem:[%s3 + $0x78] sm:$0xff]
    %v134 = vld [vmem:[%s4] sm:$0x1]
    %135 = vmatprep.subr.mxu0 0.0
    %136 = vmatpush1.msra.mxu0 %v118
    %137 = vmatprep.subr.mxu0 0.0
    %138 = vmatpush1.msra.mxu0 %v119
    %139 = vmatprep.subr.mxu0 0.0
    %140 = vmatpush1.msra.mxu0 %v120
    %141 = vmatprep.subr.mxu0 0.0
    %142 = vmatpush1.msra.mxu0 %v121
    %143 = vmatprep.subr.mxu0 0.0
    %144 = vmatpush1.msra.mxu0 %v122
    %145 = vmatprep.subr.mxu0 0.0
    %146 = vmatpush1.msra.mxu0 %v123
    %147 = vmatprep.subr.mxu0 0.0
    %148 = vmatpush1.msra.mxu0 %v124
    %149 = vmatprep.subr.mxu0 0.0
    %150 = vmatpush1.msra.mxu0 %v125
    %151 = vmatprep.subr.mxu0 0.0
    %152 = vmatpush1.msra.mxu0 %v126
    %153 = vmatprep.subr.mxu0 0.0
    %154 = vmatpush1.msra.mxu0 %v127
    %155 = vmatprep.subr.mxu0 0.0
    %156 = vmatpush1.msra.mxu0 %v128
    %157 = vmatprep.subr.mxu0 0.0
    %158 = vmatpush1.msra.mxu0 %v129
    %159 = vmatprep.subr.mxu0 0.0
    %160 = vmatpush1.msra.mxu0 %v130
    %161 = vmatprep.subr.mxu0 0.0
    %162 = vmatpush1.msra.mxu0 %v131
    %163 = vmatprep.subr.mxu0 0.0
    %164 = vmatpush1.msra.mxu0 %v132
    %165 = vmatprep.subr.mxu0 0.0
    %166 = vmatpush1.msra.mxu0 %v133
    %167 = vmatprep.subr.mxu0 0.0
    %168 = vmatpush1.msra.mxu0 0.0
    %169 = vmatprep.subr.mxu0 0.0
    %170 = vmatpush1.msra.mxu0 0.0
    %171 = vmatprep.subr.mxu0 0.0
    %172 = vmatpush1.msra.mxu0 0.0
    %173 = vmatprep.subr.mxu0 0.0
    %174 = vmatpush1.msra.mxu0 0.0
    %175 = vmatprep.subr.mxu0 0.0
    %176 = vmatpush1.msra.mxu0 0.0
    %177 = vmatprep.subr.mxu0 0.0
    %178 = vmatpush1.msra.mxu0 0.0
    %179 = vmatprep.subr.mxu0 0.0
    %180 = vmatpush1.msra.mxu0 0.0
    %181 = vmatprep.subr.mxu0 0.0
    %182 = vmatpush1.msra.mxu0 0.0
    %183 = vmatprep.subr.mxu0 0.0
    %184 = vmatpush1.msra.mxu0 0.0
    %185 = vmatprep.subr.mxu0 0.0
    %186 = vmatpush1.msra.mxu0 0.0
    %187 = vmatprep.subr.mxu0 0.0
    %188 = vmatpush1.msra.mxu0 0.0
    %189 = vmatprep.subr.mxu0 0.0
    %190 = vmatpush1.msra.mxu0 0.0
    %191 = vmatprep.subr.mxu0 0.0
    %192 = vmatpush1.msra.mxu0 0.0
    %193 = vmatprep.subr.mxu0 0.0
    %194 = vmatpush1.msra.mxu0 0.0
    %195 = vmatprep.subr.mxu0 0.0
    %196 = vmatpush1.msra.mxu0 0.0
    %197 = vmatprep.subr.mxu0 0.0
    %198 = vmatpush1.msra.mxu0 0.0
    %199 = vmatprep.mubr.f32.mxu0 0.0
    %200 = vmatmul.mubr.f32.gmra.mrb[0].mxu0 %v117
    %v201 = vpop.f32.mrb[0].mxu0
    %v202 = vadd.f32 %v134, %v201
    %v203 = vpop.f32.mrb[0].mxu0
    %204 = vdwg.mxu0
    %v205 = vmax.f32 %v202, 0.0
    %v206 = vld [vmem:[%s5] sm:$0xff]
    %v207 = vld [vmem:[%s5 + $0x8] sm:$0xff]
    %v208 = vld [vmem:[%s5 + $0x10] sm:$0xff]
    %v209 = vld [vmem:[%s5 + $0x18] sm:$0xff]
    %v210 = vld [vmem:[%s5 + $0x20] sm:$0xff]
    %v211 = vld [vmem:[%s5 + $0x28] sm:$0xff]
    %v212 = vld [vmem:[%s5 + $0x30] sm:$0xff]
    %v213 = vld [vmem:[%s5 + $0x38] sm:$0xff]
    %v214 = vld [vmem:[%s6] sm:$0x1]
    %vm215 = vcmask 523264
    %v217 = vsel %vm215, %v205, 0
    %219 = vmatprep.subr.mxu0 0.0
    %220 = vmatpush1.msra.mxu0 %v206
    %221 = vmatprep.subr.mxu0 0.0
    %222 = vmatpush1.msra.mxu0 %v207
    %223 = vmatprep.subr.mxu0 0.0
    %224 = vmatpush1.msra.mxu0 %v208
    %225 = vmatprep.subr.mxu0 0.0
    %226 = vmatpush1.msra.mxu0 %v209
    %227 = vmatprep.subr.mxu0 0.0
    %228 = vmatpush1.msra.mxu0 %v210
    %229 = vmatprep.subr.mxu0 0.0
    %230 = vmatpush1.msra.mxu0 %v211
    %231 = vmatprep.subr.mxu0 0.0
    %232 = vmatpush1.msra.mxu0 %v212
    %233 = vmatprep.subr.mxu0 0.0
    %234 = vmatpush1.msra.mxu0 %v213
    %235 = vmatprep.subr.mxu0 0.0
    %236 = vmatpush1.msra.mxu0 0.0
    %237 = vmatprep.subr.mxu0 0.0
    %238 = vmatpush1.msra.mxu0 0.0
    %239 = vmatprep.subr.mxu0 0.0
    %240 = vmatpush1.msra.mxu0 0.0
    %241 = vmatprep.subr.mxu0 0.0
    %242 = vmatpush1.msra.mxu0 0.0
    %243 = vmatprep.subr.mxu0 0.0
    %244 = vmatpush1.msra.mxu0 0.0
    %245 = vmatprep.subr.mxu0 0.0
    %246 = vmatpush1.msra.mxu0 0.0
    %247 = vmatprep.subr.mxu0 0.0
    %248 = vmatpush1.msra.mxu0 0.0
    %249 = vmatprep.subr.mxu0 0.0
    %250 = vmatpush1.msra.mxu0 0.0
    %251 = vmatprep.subr.mxu0 0.0
    %252 = vmatpush1.msra.mxu0 0.0
    %253 = vmatprep.subr.mxu0 0.0
    %254 = vmatpush1.msra.mxu0 0.0
    %255 = vmatprep.subr.mxu0 0.0
    %256 = vmatpush1.msra.mxu0 0.0
    %257 = vmatprep.subr.mxu0 0.0
    %258 = vmatpush1.msra.mxu0 0.0
    %259 = vmatprep.subr.mxu0 0.0
    %260 = vmatpush1.msra.mxu0 0.0
    %261 = vmatprep.subr.mxu0 0.0
    %262 = vmatpush1.msra.mxu0 0.0
    %263 = vmatprep.subr.mxu0 0.0
    %264 = vmatpush1.msra.mxu0 0.0
    %265 = vmatprep.subr.mxu0 0.0
    %266 = vmatpush1.msra.mxu0 0.0
    %267 = vmatprep.subr.mxu0 0.0
    %268 = vmatpush1.msra.mxu0 0.0
    %269 = vmatprep.subr.mxu0 0.0
    %270 = vmatpush1.msra.mxu0 0.0
    %271 = vmatprep.subr.mxu0 0.0
    %272 = vmatpush1.msra.mxu0 0.0
    %273 = vmatprep.subr.mxu0 0.0
    %274 = vmatpush1.msra.mxu0 0.0
    %275 = vmatprep.subr.mxu0 0.0
    %276 = vmatpush1.msra.mxu0 0.0
    %277 = vmatprep.subr.mxu0 0.0
    %278 = vmatpush1.msra.mxu0 0.0
    %279 = vmatprep.subr.mxu0 0.0
    %280 = vmatpush1.msra.mxu0 0.0
    %281 = vmatprep.subr.mxu0 0.0
    %282 = vmatpush1.msra.mxu0 0.0
    %283 = vmatprep.mubr.f32.mxu0 0.0
    %284 = vmatmul.mubr.f32.gmra.mrb[0].mxu0 %v217
    %v285 = vpop.f32.mrb[0].mxu0
    %v286 = vadd.f32 %v214, %v285
    %v287 = vpop.f32.mrb[0].mxu0
    %288 = vdwg.mxu0
    %vm289 = vcmask 57344
    %290 = vst.msk [vmem:[#allocation2] sm:$0x1] %vm289, %v286
    // Predicated region
    $region30: #{tpu_custom_call.1} parent=1 // pred_check
      _
    $region31: #{tpu_custom_call.1} parent=1 // pred_check_branch
      %292 = sbr.rel (0) target = $region33
    $region32: #{tpu_custom_call.1} parent=1 // pred_region
      %s294 = ssub.s32 16, 16
      %295 = vsyncadd [#allocation3], %s294
      %s297 = sshll.u32 [#allocation2], 4
      %s298 = int_to_ptr.vmem [resolvable:$true] %s297
      %300 = dma.vmem_to_hbm [thread:$0]  %s298, 16, %s7, [#allocation3]
    $region33: #{tpu_custom_call.1} parent=1 // pred_fallthru
      _
    // Predicated region
    $region34: #{tpu_custom_call.1} parent=1 // pred_check
      _
    $region35: #{tpu_custom_call.1} parent=1 // pred_check_branch
      %302 = sbr.rel (0) target = $region37
    $region36: #{tpu_custom_call.1} parent=1 // pred_region
      %303 = dma.done [#allocation3], 16
    $region37: #{tpu_custom_call.1} parent=1 // pred_fallthru
      _
    %304 = vsyncpa [#allocation3], 1

</llo_original>
